<compile_context>
chip_gen: v6e
topology: v6e:2x2x1
jax: 0.10.0
libtpu: 0.0.40
codegen_flags: <defaults>
</compile_context>

<pallas_src>
import numpy as np
import jax
import jax.numpy as jnp
from jax.experimental import pallas as pl
from jax.experimental.pallas import tpu as pltpu

KERNEL_SIZE = 25  # fixed in the PyTorch module


def _moving_avg_matrix(seq_len: int, kernel_size: int) -> np.ndarray:
    """[L, L] matrix implementing edge-replicated moving average (stride 1)."""
    pad = (kernel_size - 1) // 2
    A = np.zeros((seq_len, seq_len), dtype=np.float32)
    for t in range(seq_len):
        for w in range(kernel_size):
            p = t + w                                   # index in padded sequence
            j = min(max(p - pad, 0), seq_len - 1)       # edge replication
            A[t, j] += 1.0 / kernel_size
    return A


def dlinear_kernel(w_ref, x_ref, o_ref):
    # One MXU matmul per column tile: [P, L+1] @ [L+1, TN] -> [P, TN],
    # bf16 operands, f32 accumulation, f32 store (lane-dense, unmasked).
    o_ref[...] = jnp.dot(
        w_ref[...], x_ref[...], preferred_element_type=jnp.float32
    ).astype(o_ref.dtype)


def dlinear_forward(x, w_seasonal, b_seasonal, w_trend, b_trend,
                    *, vmem_budget_bytes=24 * 1024 * 1024):
    """x: [B, L, C] -> [B, P, C]  (configs.individual == False)."""
    # TODO(synk): configs.individual == True (per-channel Linears) would need a
    #             block-diagonal W_eff (or a C-indexed weight grid axis); only
    #             the shared-weight path is implemented here.
    B, L, C = x.shape
    P = w_seasonal.shape[0]

    # ---- fold decomposition + both Linears + bias into ONE augmented weight.
    #      Fold stays in f32; only the final streamed operand is cast to bf16.
    A = jnp.asarray(_moving_avg_matrix(L, KERNEL_SIZE))                  # [L, L]
    w_s = w_seasonal.astype(jnp.float32)
    w_t = w_trend.astype(jnp.float32)
    w_eff = w_s + jnp.dot(w_t - w_s, A)                                  # [P, L]
    bias = (b_seasonal + b_trend).astype(jnp.float32).reshape(P, 1)      # [P, 1]
    w_aug = jnp.concatenate([w_eff, bias], axis=1).astype(jnp.bfloat16)  # [P, L+1]
    K = L + 1

    # ---- lane-dense layout: cast to bf16 FIRST (halves the transpose copy),
    #      then [B, L, C] -> [L, B*C], append a ones-row for the bias fold.
    # TODO(synk): for very large enc_in, grid over (B, C-tiles) on the native
    #             [B, L, C] layout instead and skip this transpose copy.
    N = B * C
    x2 = jnp.transpose(x.astype(jnp.bfloat16), (1, 0, 2)).reshape(L, N)
    x2 = jnp.concatenate([x2, jnp.ones((1, N), jnp.bfloat16)], axis=0)   # [K, N]

    # ---- column tiling: largest 128-multiple tile under the VMEM budget
    #      (bf16 input + f32 output columns, double-buffered), after
    #      subtracting the double-buffered resident weight; always >= 2
    #      blocks when possible so both v7x TensorCores get work.
    per_unit = 2 * 128 * (K * 2 + P * 4)        # per 128 lanes, double-buffered
    weight_bytes = 2 * P * K * 2                # w_aug is double-buffered too
    col_budget = max(per_unit, vmem_budget_bytes - weight_bytes)
    max_units = max(1, col_budget // per_unit)

    np_units = pl.cdiv(N, 128)
    min_blocks = pl.cdiv(np_units, max_units)
    if np_units >= 2:
        min_blocks = max(min_blocks, 2)
    tn_units = pl.cdiv(np_units, min_blocks)
    TN = tn_units * 128
    num_blocks = pl.cdiv(np_units, tn_units)
    Np = num_blocks * TN
    if Np != N:
        # Zero pad: padded columns (incl. the ones-row) are zero -> sliced off.
        x2 = jnp.pad(x2, ((0, 0), (0, Np - N)))

    vmem_limit = int(min(vmem_budget_bytes + (8 << 20), 48 << 20))

    out = pl.pallas_call(
        dlinear_kernel,
        out_shape=jax.ShapeDtypeStruct((P, Np), jnp.float32),
        grid_spec=pltpu.PrefetchScalarGridSpec(
            num_scalar_prefetch=0,
            grid=(num_blocks,),
            in_specs=[
                # TODO(synk): pipeline_mode=pl.Buffered(1) here would stop
                #             double-buffering the grid-invariant weight
                #             (frees ~1-2 MiB of VMEM, mostly relevant on v7x).
                pl.BlockSpec((P, K), lambda j: (0, 0)),    # W_aug (grid-invariant)
                pl.BlockSpec((K, TN), lambda j: (0, j)),   # x column slab
            ],
            out_specs=pl.BlockSpec((P, TN), lambda j: (0, j)),
        ),
        compiler_params=pltpu.CompilerParams(
            dimension_semantics=("parallel",),
            vmem_limit_bytes=vmem_limit),
    )(w_aug, x2)

    # ---- back to [B, P, C] (matches the PyTorch forward's final permute) ----
    # TODO(synk): consumers that accept [P, B*C] directly should take `out`
    #             pre-permute to avoid this extra mem-bound copy.
    out = out[:, :N].reshape(P, B, C)
    return jnp.transpose(out, (1, 0, 2)).astype(x.dtype)


def dlinear_reference(x, w_seasonal, b_seasonal, w_trend, b_trend):
    """Pure-JAX f32 reference mirroring the PyTorch forward (individual=False)."""
    B, L, C = x.shape
    pad = (KERNEL_SIZE - 1) // 2
    front = jnp.repeat(x[:, 0:1, :], pad, axis=1)
    end = jnp.repeat(x[:, -1:, :], pad, axis=1)
    xp = jnp.concatenate([front, x, end], axis=1)             # [B, L+2*pad, C]
    windows = jnp.stack([xp[:, t:t + KERNEL_SIZE, :] for t in range(L)], axis=1)
    trend = windows.mean(axis=2)                               # [B, L, C]
    res = x - trend
    seasonal_init = jnp.transpose(res, (0, 2, 1))              # [B, C, L]
    trend_init = jnp.transpose(trend, (0, 2, 1))
    seasonal_out = seasonal_init @ w_seasonal.T + b_seasonal   # [B, C, P]
    trend_out = trend_init @ w_trend.T + b_trend
    out = seasonal_out + trend_out
    return jnp.transpose(out, (0, 2, 1))                       # [B, P, C]


if __name__ == "__main__":
    # Small but non-trivial: B*C = 192 -> 2 column blocks of 128 lanes
    # (exercises padding, the >=2-block split, and the grid).
    B, L, P, C = 2, 64, 32, 96       # batch, seq_len, pred_len, enc_in

    key = jax.random.PRNGKey(0)
    kx, k1, k2, k3, k4 = jax.random.split(key, 5)

    x = jax.random.normal(kx, (B, L, C), dtype=jnp.float32)

    # nn.Linear(seq_len, pred_len) parameter shapes: W [P, L], b [P]
    bound = 1.0 / np.sqrt(L)
    w_seasonal = jax.random.uniform(k1, (P, L), jnp.float32, -bound, bound)
    b_seasonal = jax.random.uniform(k2, (P,), jnp.float32, -bound, bound)
    w_trend = jax.random.uniform(k3, (P, L), jnp.float32, -bound, bound)
    b_trend = jax.random.uniform(k4, (P,), jnp.float32, -bound, bound)

    out = dlinear_forward(x, w_seasonal, b_seasonal, w_trend, b_trend)
    out = jax.block_until_ready(out)

    ref = dlinear_reference(x, w_seasonal, b_seasonal, w_trend, b_trend)
    # bf16 streaming operands -> tolerance loosened vs the all-f32 version.
    np.testing.assert_allclose(np.asarray(out), np.asarray(ref),
                               rtol=2e-2, atol=2e-2)
    print("KERNEL_OK")
</pallas_src>

<mosaic_0001>
module attributes {stable_mosaic.version = 11 : i64} {
  func.func @dlinear_kernel(%arg0: i32, %arg1: memref<32x65xbf16, #tpu.memory_space<vmem>>, %arg2: memref<65x128xbf16, #tpu.memory_space<vmem>>, %arg3: memref<32x128xf32, #tpu.memory_space<vmem>>) attributes {dimension_semantics = [#tpu.dimension_semantics<parallel>], iteration_bounds = array<i64: 2>, scalar_prefetch = 0 : i64, scratch_operands = 0 : i64, tpu.core_type = #tpu.core_type<tc>, window_params = [{pipeline_mode = #tpu.pipeline_mode<synchronous>, transform_indices = @transform_0, window_bounds = array<i64: 32, 65>}, {transform_indices = @transform_1, window_bounds = array<i64: 65, 128>}, {transform_indices = @transform_2, window_bounds = array<i64: 32, 128>}]} {
    %c0 = arith.constant 0 : index
    %c0_0 = arith.constant 0 : index
    %0 = vector.load %arg1[%c0, %c0_0] : memref<32x65xbf16, #tpu.memory_space<vmem>>, vector<32x65xbf16>
    %c0_1 = arith.constant 0 : index
    %c0_2 = arith.constant 0 : index
    %1 = vector.load %arg2[%c0_1, %c0_2] : memref<65x128xbf16, #tpu.memory_space<vmem>>, vector<65x128xbf16>
    %cst = arith.constant dense<0.000000e+00> : vector<32x128xf32>
    %2 = tpu.matmul %0, %1, %cst {dimension_numbers = #tpu.dot_dimension_numbers<[1], [0], [0], [1], [0, 0, 1, 1], [], []>} : vector<32x65xbf16>, vector<65x128xbf16>, vector<32x128xf32> -> vector<32x128xf32>
    %c0_3 = arith.constant 0 : index
    %c0_4 = arith.constant 0 : index
    %3 = vector.load %arg3[%c0_3, %c0_4] : memref<32x128xf32, #tpu.memory_space<vmem>>, vector<32x128xf32>
    tpu.vector_store %arg3[%c0_3, %c0_4], %2 {strides = array<i32>} : memref<32x128xf32, #tpu.memory_space<vmem>>, vector<32x128xf32>,
    return
  }
  func.func @transform_0(%arg0: i32) -> (i32, i32) {
    %c0_i32 = arith.constant 0 : i32
    %c0_i32_0 = arith.constant 0 : i32
    %c0_i32_1 = arith.constant 0 : i32
    return %c0_i32, %c0_i32_0 : i32, i32
  }
  func.func @transform_1(%arg0: i32) -> (i32, i32) {
    %c0_i32 = arith.constant 0 : i32
    %c0_i32_0 = arith.constant 0 : i32
    return %c0_i32, %arg0 : i32, i32
  }
  func.func @transform_2(%arg0: i32) -> (i32, i32) {
    %c0_i32 = arith.constant 0 : i32
    %c0_i32_0 = arith.constant 0 : i32
    return %c0_i32, %arg0 : i32, i32
  }
}

</mosaic_0001>

<llo_original>
// kernel: tpu_custom_call.1
$region0: #{tpu_custom_call.1}
  #allocation0 [shape = 'u32[]', space=smem, size = 0x4, offset = 0x4, fixed_abs, tag = 'smem constant byte address 0x4 - core index']
  #allocation1 [shape = 'u32[144,128]{1,0:T(1,128)}', space=vmem, size = 0x12000, scoped, tag = 'internal scratch']
  %s0 = inlined_call_operand.hbm [shape: bf16[32,65], index: 0, kind: input, shape index: {}]
  %s1 = inlined_call_operand.hbm [shape: bf16[65,256], index: 1, kind: input, shape index: {}]
  %s2 = inlined_call_operand.hbm [shape: f32[32,256], index: 2, kind: output, shape index: {}]
  %s3 = sld [smem:[#allocation0]]
  $region49: #{tpu_custom_call.1} parent=0
    _
  %s5 = ssub.s32 1, %s3
  %s6 = scalar_select 0, %s5, %s3
  $region1: #{tpu_custom_call.1} parent=0
    #allocation2 [shape = 'u8[8192]{0}', space=vmem, size = 0x2000, scoped, tag = 'input window, operand 0, single buffered']
    #allocation3 [shape = 's32[2]{0}', space=sflag, size = 0x8, scoped, tag = 'scoped memory for tpu_custom_call.1']
    #allocation4 [shape = 's32[2]{0}', space=sflag, size = 0x8, scoped, tag = 'scoped memory for tpu_custom_call.1']
    #allocation5 [shape = 'u8[36864]{0}', space=vmem, size = 0x9000, scoped, tag = 'input window, operand 1']
    #allocation6 [shape = 's32[2]{0}', space=sflag, size = 0x8, scoped, tag = 'scoped memory for tpu_custom_call.1']
    #allocation7 [shape = 'u8[32768]{0}', space=vmem, size = 0x8000, scoped, tag = 'output window, operand 0']
    %7 = vsyncpa [#allocation3], 0
    %8 = vsyncpa [#allocation6], 0
    %s9 = scalar_lea.sflag [#allocation6], 1
    %10 = vsyncpa %s9, 0
    %11 = vsyncpa [#allocation4], 0
    %s12 = scalar_lea.sflag [#allocation4], 1
    %13 = vsyncpa %s12, 0
    loop: start=0, step=1, limit=4
    $region2: #{tpu_custom_call.1} parent=1 // loop_pre_header
      _
    $region3: #{tpu_custom_call.1} parent=1 // loop_header
      %s15 = sphi 0, %s19
      %p16 = scmp.ge.s32.totalorder %s15, 4
      %s23 = sphi 0, %s23
      %s25 = sphi 0, %s23
      %s26 = sphi 0, %s25
      %s40 = sphi 0, %s26
      %s46 = sphi 0, %s48
      %s49 = sphi 0, %s46
      %s50 = sphi 0, %s49
      %s66 = sphi 0, %s50
      %s72 = sphi 0, %s74
      %s75 = sphi 0, %s72
      %s76 = sphi 0, %s75
      %s92 = sphi 0, %s76
    $region4: #{tpu_custom_call.1} parent=1 // loop_header_branch
      %18 = sbr.rel (%p16) target = $region8
    $region5: #{tpu_custom_call.1} parent=1 // loop_body
      %s20 = ssub.s32 %s15, 1
      %s21 = ssub.s32 %s15, 2
      %s22 = sadd.s32 %s15, 1
      %s24 = sadd.s32 %s23, 1
      %p27 = scmp.eq.s32.totalorder %s15, 1
      %p28 = scmp.ne.s32.totalorder %s23, %s25
      %p29 = scmp.eq.s32.totalorder %s15, 0
      %p30 = por %p28, %p29
      %p31 = scmp.ne.s32.totalorder %s23, %s25
      %p32 = scmp.eq.s32.totalorder %s20, 1
      %p33 = por %p31, %p32
      %p34 = scmp.ne.s32.totalorder %s25, %s26
      %p35 = scmp.eq.s32.totalorder %s20, 0
      %p36 = por %p34, %p35
      %p37 = scmp.ne.s32.totalorder %s25, %s26
      %p38 = scmp.eq.s32.totalorder %s21, 1
      %p39 = por %p37, %p38
      %p41 = scmp.ne.s32.totalorder %s26, %s40
      %p42 = scmp.eq.s32.totalorder %s21, 0
      %p43 = por %p41, %p42
      %s44 = ssub.s32 %s15, %s22
      %p45 = scmp.eq.s32.totalorder %s44, 0
      %s47 = sadd.s32 %s46, 1
      %s48 = scalar_select %p45, %s46, %s47
      %p51 = pneg %p45
      %p52 = scmp.eq.s32.totalorder %s15, 1
      %p53 = por %p51, %p52
      %p54 = scmp.ne.s32.totalorder %s46, %s49
      %p55 = scmp.eq.s32.totalorder %s15, 0
      %p56 = por %p54, %p55
      %p57 = scmp.ne.s32.totalorder %s46, %s49
      %p58 = scmp.eq.s32.totalorder %s20, 1
      %p59 = por %p57, %p58
      %p60 = scmp.ne.s32.totalorder %s49, %s50
      %p61 = scmp.eq.s32.totalorder %s20, 0
      %p62 = por %p60, %p61
      %p63 = scmp.ne.s32.totalorder %s49, %s50
      %p64 = scmp.eq.s32.totalorder %s21, 1
      %p65 = por %p63, %p64
      %p67 = scmp.ne.s32.totalorder %s50, %s66
      %p68 = scmp.eq.s32.totalorder %s21, 0
      %p69 = por %p67, %p68
      %s70 = ssub.s32 %s15, %s22
      %p71 = scmp.eq.s32.totalorder %s70, 0
      %s73 = sadd.s32 %s72, 1
      %s74 = scalar_select %p71, %s72, %s73
      %p77 = pneg %p71
      %p78 = scmp.eq.s32.totalorder %s15, 1
      %p79 = por %p77, %p78
      %p80 = scmp.ne.s32.totalorder %s72, %s75
      %p81 = scmp.eq.s32.totalorder %s15, 0
      %p82 = por %p80, %p81
      %p83 = scmp.ne.s32.totalorder %s72, %s75
      %p84 = scmp.eq.s32.totalorder %s20, 1
      %p85 = por %p83, %p84
      %p86 = scmp.ne.s32.totalorder %s75, %s76
      %p87 = scmp.eq.s32.totalorder %s20, 0
      %p88 = por %p86, %p87
      %p89 = scmp.ne.s32.totalorder %s75, %s76
      %p90 = scmp.eq.s32.totalorder %s21, 1
      %p91 = por %p89, %p90
      %p93 = scmp.ne.s32.totalorder %s76, %s92
      %p94 = scmp.eq.s32.totalorder %s21, 0
      %p95 = por %p93, %p94
      %p96 = scmp.le.s32.totalorder 1, %s15
      %p97 = scmp.lt.s32.totalorder %s15, 3
      %p98 = pnand %p96, %p97
      %p99 = pneg %p98
      // Predicated region
      $region9: #{tpu_custom_call.1} parent=5 // pred_check
        _
      $region10: #{tpu_custom_call.1} parent=5 // pred_check_branch
        %101 = sbr.rel (%p98) target = $region12
      $region11: #{tpu_custom_call.1} parent=5 // pred_region
        %s102 = ssub.s32 %s15, 1
        // Predicated region
        $region13: #{tpu_custom_call.1} parent=11 // pred_check
          %p103 = pneg %p36
        $region14: #{tpu_custom_call.1} parent=11 // pred_check_branch
          %105 = sbr.rel (%p103) target = $region16
        $region15: #{tpu_custom_call.1} parent=11 // pred_region
          %s107 = ssub.s32 256, 256
          %108 = vsyncadd [#allocation3], %s107
          %s109 = sshll.u32 [#allocation2], 4
          %s110 = int_to_ptr.vmem [resolvable:$true] %s109
          %115 = dma.hbm_to_vmem [thread:$0]  %s0, 256, %s110, [#allocation3], 64, 64, 4
        $region16: #{tpu_custom_call.1} parent=11 // pred_fallthru
          _
      $region12: #{tpu_custom_call.1} parent=5 // pred_fallthru
        _
      %p116 = scmp.lt.s32.totalorder %s15, 2
      // Predicated region
      $region17: #{tpu_custom_call.1} parent=5 // pred_check
        %p117 = pneg %p116
      $region18: #{tpu_custom_call.1} parent=5 // pred_check_branch
        %119 = sbr.rel (%p117) target = $region20
      $region19: #{tpu_custom_call.1} parent=5 // pred_region
        // Predicated region
        $region21: #{tpu_custom_call.1} parent=19 // pred_check
          %p120 = pneg %p56
        $region22: #{tpu_custom_call.1} parent=19 // pred_check_branch
          %122 = sbr.rel (%p120) target = $region24
        $region23: #{tpu_custom_call.1} parent=19 // pred_region
          %s123 = sand.u32 %s46, 1
          %s124 = scalar_lea.sflag [#allocation6], %s123
          %s125 = sand.u32 %s46, 1
          %s126 = smul.addr %s125, 36
          %s127 = scalar_lea.vmem [#allocation5], %s126
          %s129 = ssub.s32 576, 576
          %130 = vsyncadd %s124, %s129
          %s131 = smul.addr %s15, 64
          %s132 = scalar_lea.hbm %s1, %s131
          %s133 = sshll.u32 %s127, 4
          %s134 = int_to_ptr.vmem [resolvable:$true] %s133
          %139 = dma.hbm_to_vmem [thread:$0]  %s132, 576, %s134, %s124, 128, 64, 4
        $region24: #{tpu_custom_call.1} parent=19 // pred_fallthru
          _
      $region20: #{tpu_custom_call.1} parent=5 // pred_fallthru
        _
      %p140 = scmp.le.s32.totalorder 1, %s15
      %p141 = scmp.lt.s32.totalorder %s15, 3
      %p142 = pnand %p140, %p141
      %p143 = pneg %p142
      // Predicated region
      $region25: #{tpu_custom_call.1} parent=5 // pred_check
        _
      $region26: #{tpu_custom_call.1} parent=5 // pred_check_branch
        %145 = sbr.rel (%p142) target = $region28
      $region27: #{tpu_custom_call.1} parent=5 // pred_region
        %s146 = ssub.s32 %s15, 1
        // Predicated region
        $region29: #{tpu_custom_call.1} parent=27 // pred_check
          %p147 = pneg %p36
        $region30: #{tpu_custom_call.1} parent=27 // pred_check_branch
          %149 = sbr.rel (%p147) target = $region32
        $region31: #{tpu_custom_call.1} parent=27 // pred_region
          %150 = dma.done [#allocation3], 256
        $region32: #{tpu_custom_call.1} parent=27 // pred_fallthru
          _
        %s151 = sand.u32 %s49, 1
        %s152 = scalar_lea.sflag [#allocation6], %s151
        %s153 = sand.u32 %s49, 1
        %s154 = smul.addr %s153, 36
        %s155 = scalar_lea.vmem [#allocation5], %s154
        // Predicated region
        $region33: #{tpu_custom_call.1} parent=27 // pred_check
          %p156 = pneg %p62
        $region34: #{tpu_custom_call.1} parent=27 // pred_check_branch
          %158 = sbr.rel (%p156) target = $region36
        $region35: #{tpu_custom_call.1} parent=27 // pred_region
          %159 = dma.done %s152, 576
        $region36: #{tpu_custom_call.1} parent=27 // pred_fallthru
          _
        %p160 = pneg %p36
        %p161 = pneg %p33
        %s162 = sand.u32 %s49, 1
        %s163 = scalar_lea.sflag [#allocation6], %s162
        %s164 = sand.u32 %s49, 1
        %s165 = smul.addr %s164, 36
        %s166 = scalar_lea.vmem [#allocation5], %s165
        %p167 = pneg %p62
        %p168 = pneg %p59
        %p169 = pneg %p88
        %p170 = pneg %p85
        %s171 = sand.u32 %s75, 1
        %s172 = scalar_lea.sflag [#allocation4], %s171
        %s173 = sand.u32 %s75, 1
        %s174 = smul.addr %s173, 32
        %s175 = scalar_lea.vmem [#allocation7], %s174
        %v177 = vld [vmem:[#allocation2] sm:$0xf]
        %v178 = vld [vmem:[#allocation2 + $0x4] sm:$0xf]
        %v179 = vld [vmem:[#allocation2 + $0x8] sm:$0xf]
        %v180 = vld [vmem:[#allocation2 + $0xc] sm:$0xf]
        %v181 = vld [vmem:[%s155] sm:$0xf]
        %v182 = vld [vmem:[%s155 + $0x4] sm:$0xf]
        %v183 = vld [vmem:[%s155 + $0x8] sm:$0xf]
        %v184 = vld [vmem:[%s155 + $0xc] sm:$0xf]
        %v185 = vld [vmem:[%s155 + $0x10] sm:$0xf]
        %v186 = vld [vmem:[%s155 + $0x14] sm:$0xf]
        %v187 = vld [vmem:[%s155 + $0x18] sm:$0xf]
        %v188 = vld [vmem:[%s155 + $0x1c] sm:$0xf]
        %v189 = vld [vmem:[%s155 + $0x20] sm:$0x1]
        %v194 = vunpack.c.l.b16 %v177
        %v195 = vunpack.c.l.b16 %v178
        %v196 = vunpack.c.l.b16 %v179
        %v197 = vunpack.c.l.b16 %v180
        %v198 = vpack.c.b16 %v195, %v194
        %v199 = vpack.c.b16 %v197, %v196
        %v209 = vunpack.c.l.b16 %v181
        %v210 = vunpack.c.l.b16 %v182
        %v211 = vunpack.c.l.b16 %v183
        %v212 = vunpack.c.l.b16 %v184
        %v213 = vunpack.c.l.b16 %v185
        %v214 = vunpack.c.l.b16 %v186
        %v215 = vunpack.c.l.b16 %v187
        %v216 = vunpack.c.l.b16 %v188
        %v217 = vunpack.c.l.b16 %v189
        %v218 = vpack.c.b16 %v210, %v209
        %v219 = vpack.c.b16 %v212, %v211
        %v220 = vpack.c.b16 %v214, %v213
        %v221 = vpack.c.b16 %v216, %v215
        %v222 = vpack.c.b16 %v217, %v217
        %vm227 = vcmask 531456
        %v229 = vsel %vm227, %v198, 0
        %v232 = vsel %vm227, %v199, 0
        %vm234 = vcmask 1040384
        %v235 = vsel 0, 4294967295, 65535
        %v236 = vsel %vm234, %v235, 0
        %v238 = vand.u32 %v222, %v236
        %240 = vmatprep.subr.bf16.mxu0 0
        %241 = vmatpush1.bf16.msra.mxu0 0
        %242 = vmatprep.subr.bf16.mxu0 0
        %243 = vmatpush1.bf16.msra.mxu0 0
        %244 = vmatprep.subr.bf16.mxu0 0
        %245 = vmatpush1.bf16.msra.mxu0 0
        %246 = vmatprep.subr.bf16.mxu0 0
        %247 = vmatpush1.bf16.msra.mxu0 %v238
        %248 = vmatprep.subr.bf16.mxu0 0
        %249 = vmatpush1.bf16.msra.mxu0 %v221
        %250 = vmatprep.subr.bf16.mxu0 0
        %251 = vmatpush1.bf16.msra.mxu0 %v220
        %252 = vmatprep.subr.bf16.mxu0 0
        %253 = vmatpush1.bf16.msra.mxu0 %v219
        %254 = vmatprep.subr.bf16.mxu0 0
        %255 = vmatpush1.bf16.msra.mxu0 %v218
        %256 = vmatprep.subr.bf16.mxu0 0
        %257 = vmatpush2.bf16.msra.mxu0 0
        %258 = vmatprep.subr.bf16.mxu0 0
        %259 = vmatpush2.bf16.msra.mxu0 0
        %260 = vmatprep.subr.bf16.mxu0 0
        %261 = vmatpush2.bf16.msra.mxu0 0
        %262 = vmatprep.subr.bf16.mxu0 0
        %263 = vmatpush2.bf16.msra.mxu0 0
        %264 = vmatprep.subr.bf16.mxu0 0
        %265 = vmatpush2.bf16.msra.mxu0 0
        %266 = vmatprep.subr.bf16.mxu0 0
        %267 = vmatpush2.bf16.msra.mxu0 0
        %268 = vmatprep.subr.bf16.mxu0 0
        %269 = vmatpush2.bf16.msra.mxu0 0
        %270 = vmatprep.subr.bf16.mxu0 0
        %271 = vmatpush2.bf16.msra.mxu0 0
        %272 = vmatprep.mubr.bf16.mxu0 0
        %273 = vmatmul.mubr.bf16.gmra.mxu0 %v229
        %v274 = vpop.f32.mrf.mxu0
        %v275 = vadd.f32 0.0, %v274
        %v276 = vpop.f32.mrf.mxu0
        %v277 = vpop.f32.mrf.mxu0
        %v278 = vadd.f32 0.0, %v277
        %v279 = vpop.f32.mrf.mxu0
        %280 = vmatprep.mubr.bf16.mxu0 0
        %281 = vmatmul.mubr.bf16.gmra.mxu0 %v232
        %v282 = vpop.f32.mrf.mxu0
        %v283 = vadd.f32 0.0, %v282
        %v284 = vpop.f32.mrf.mxu0
        %v285 = vpop.f32.mrf.mxu0
        %v286 = vadd.f32 0.0, %v285
        %v287 = vpop.f32.mrf.mxu0
        %288 = vdwg.mxu0
        %289 = vst [vmem:[%s175] sm:$0xff] %v275
        %290 = vst [vmem:[%s175 + $0x8] sm:$0xff] %v278
        %291 = vst [vmem:[%s175 + $0x10] sm:$0xff] %v283
        %292 = vst [vmem:[%s175 + $0x18] sm:$0xff] %v286
        %s293 = sand.u32 %s75, 1
        %s294 = scalar_lea.sflag [#allocation4], %s293
        %s295 = sand.u32 %s75, 1
        %s296 = smul.addr %s295, 32
        %s297 = scalar_lea.vmem [#allocation7], %s296
        // Predicated region
        $region37: #{tpu_custom_call.1} parent=27 // pred_check
          %p298 = pneg %p85
        $region38: #{tpu_custom_call.1} parent=27 // pred_check_branch
          %300 = sbr.rel (%p298) target = $region40
        $region39: #{tpu_custom_call.1} parent=27 // pred_region
          %s302 = ssub.s32 512, 512
          %303 = vsyncadd %s294, %s302
          %s304 = smul.addr %s20, 128
          %s305 = scalar_lea.hbm %s2, %s304
          %s306 = sshll.u32 %s297, 4
          %s307 = int_to_ptr.vmem [resolvable:$true] %s306
          %312 = dma.vmem_to_hbm [thread:$0]  %s307, 512, %s305, %s294, 128, 256, 8
        $region40: #{tpu_custom_call.1} parent=27 // pred_fallthru
          _
      $region28: #{tpu_custom_call.1} parent=5 // pred_fallthru
        _
      %p313 = scmp.le.s32.totalorder 2, %s15
      // Predicated region
      $region41: #{tpu_custom_call.1} parent=5 // pred_check
        %p314 = pneg %p313
      $region42: #{tpu_custom_call.1} parent=5 // pred_check_branch
        %316 = sbr.rel (%p314) target = $region44
      $region43: #{tpu_custom_call.1} parent=5 // pred_region
        %s317 = ssub.s32 %s15, 2
        // Predicated region
        $region45: #{tpu_custom_call.1} parent=43 // pred_check
          %p318 = pneg %p91
        $region46: #{tpu_custom_call.1} parent=43 // pred_check_branch
          %320 = sbr.rel (%p318) target = $region48
        $region47: #{tpu_custom_call.1} parent=43 // pred_region
          %s321 = sand.u32 %s76, 1
          %s322 = scalar_lea.sflag [#allocation4], %s321
          %s323 = sand.u32 %s76, 1
          %s324 = smul.addr %s323, 32
          %s325 = scalar_lea.vmem [#allocation7], %s324
          %326 = dma.done %s322, 512
        $region48: #{tpu_custom_call.1} parent=43 // pred_fallthru
          _
      $region44: #{tpu_custom_call.1} parent=5 // pred_fallthru
        _
    $region6: #{tpu_custom_call.1} parent=1 // loop_footer
      %s19 = sadd.s32 1, %s15
    $region7: #{tpu_custom_call.1} parent=1 // loop_footer_branch
      %14 = sbr.rel target = $region3
    $region8: #{tpu_custom_call.1} parent=1 // loop_exit
      _
    %327 = vsyncpa [#allocation3], 1
    %s328 = scalar_lea.sflag [#allocation3], 1
    %329 = vsyncpa %s328, 1
    %330 = vsyncpa [#allocation6], 1
    %s331 = scalar_lea.sflag [#allocation6], 1
    %332 = vsyncpa %s331, 1
    %333 = vsyncpa [#allocation4], 1
    %s334 = scalar_lea.sflag [#allocation4], 1
    %335 = vsyncpa %s334, 1

</llo_original>
